<compile_context>
chip_gen: v7x
topology: tpu7x:2x2x1
jax: 0.10.0
libtpu: 0.0.40
codegen_flags: <defaults>
</compile_context>

<pallas_src>
import functools

import jax
import jax.numpy as jnp
from jax.experimental import pallas as pl
from jax.experimental.pallas import tpu as pltpu


def _tv_kernel(x_ref, hmask_ref, wmask_ref, out_ref, *,
               bc, tb, h, w, l, mask_rows, use_roll):
    """One grid step: TB flattened images -> merged (h_tv, w_tv) partials."""
    x = x_ref[...].astype(jnp.float32)          # (TB, L), lane-dense

    hm = hmask_ref[...]                          # (1, L) f32 0/1, VMEM-resident
    wm = wmask_ref[...]                          # (1, L) f32 0/1, VMEM-resident

    if use_roll:
        # Shifted copies on the XLU (full (TB, L) vreg shapes, no lane
        # realignment or partial-tail temporaries).  pltpu.roll follows
        # jnp.roll semantics, so shift = L - s gives y[j] = x[(j + s) % L];
        # the wrapped lanes are exactly the ones zeroed by the masks.
        xh = pltpu.roll(x, shift=(l - w) % l, axis=1)   # x[j + W]
        xw = pltpu.roll(x, shift=(l - 1) % l, axis=1)   # x[j + 1]
        dh = xh - x
        dw = xw - x
        ph_rows = jnp.sum(dh * dh * hm, axis=1, keepdims=True)   # (TB, 1)
        pw_rows = jnp.sum(dw * dw * wm, axis=1, keepdims=True)   # (TB, 1)
    else:
        # Fallback when L is not a multiple of 128 (lane-misaligned slices).
        if h > 1:
            dh = x[:, w:] - x[:, : l - w]
            ph_rows = jnp.sum(dh * dh, axis=1, keepdims=True)
        else:
            ph_rows = jnp.zeros((tb, 1), jnp.float32)
        if w > 1:
            dw = x[:, 1:] - x[:, : l - 1]
            pw_rows = jnp.sum(dw * dw * wm[:, : l - 1], axis=1, keepdims=True)
        else:
            pw_rows = jnp.zeros((tb, 1), jnp.float32)

    if mask_rows:
        # Only the padded last block can hold rows (images) past B*C; zero
        # their per-row partials (true select, so NaN/Inf garbage is dropped).
        i = pl.program_id(0)
        r = jax.lax.broadcasted_iota(jnp.int32, (tb, 1), 0)
        valid = (i * tb + r) < bc
        ph_rows = jnp.where(valid, ph_rows, 0.0)
        pw_rows = jnp.where(valid, pw_rows, 0.0)

    ph = jnp.sum(ph_rows)
    pw = jnp.sum(pw_rows)

    # Merged, lane-dense, unmasked output stores.
    out_ref[:, :, 0:128] = jnp.broadcast_to(ph, (1, 8, 128))
    out_ref[:, :, 128:256] = jnp.broadcast_to(pw, (1, 8, 128))


def tv_loss(x, tv_loss_weight=1.0):
    """Exact equivalent of TVLoss.forward for an NCHW input."""
    B, C, H, W = x.shape
    BC = B * C
    L = H * W
    xf = x.reshape(BC, L)                        # free, contiguous reshape

    # Precomputed 0/1 edge masks (built once in the wrapper, fetched once by
    # the kernel through a constant index_map).
    lane = jnp.arange(L, dtype=jnp.int32)
    h_mask = (lane < (H - 1) * W).astype(jnp.float32).reshape(1, L)
    w_mask = ((lane % W) != (W - 1)).astype(jnp.float32).reshape(1, L)

    # ---- block sizing -----------------------------------------------------
    l_pad = ((max(L, 1) + 127) // 128) * 128
    row_bytes = 4 * l_pad
    target_block_bytes = 4 * 1024 * 1024         # ~4 MiB of f32 per block
    tb_budget = max(1, target_block_bytes // row_bytes)

    if BC <= 8:
        TB = BC                                   # full-extent (tiny) block
    else:
        tb = min(tb_budget, BC)
        min_g = 4 if BC >= 64 else 2              # keep >=2 blocks for megacore
        tb = min(tb, pl.cdiv(BC, min_g))
        # TODO(synk): for very large images (tb < 8 here) a second "arbitrary"
        # grid axis tiling L (with seam masking) would keep blocks within the
        # VMEM budget; we currently fall back to 8 rows per block.
        TB = max(8, (tb // 8) * 8)
        TB = min(TB, BC)
    G = pl.cdiv(BC, TB)
    mask_rows = (BC % TB) != 0
    block_bytes = TB * row_bytes

    use_roll = (L % 128 == 0) and L >= 128

    # Generation-aware VMEM limit with headroom under the per-core physical cap.
    try:
        vmem_cap = int(getattr(pltpu.get_tpu_info(), "vmem_capacity_bytes"))
    except Exception:
        vmem_cap = 64 * 1024 * 1024
    vmem_limit = max(32 * 1024 * 1024, 12 * block_bytes)
    vmem_limit = int(min(vmem_limit, (vmem_cap * 3) // 4))

    kernel = functools.partial(
        _tv_kernel, bc=BC, tb=TB, h=H, w=W, l=L,
        mask_rows=mask_rows, use_roll=use_roll)

    itemsize = jnp.dtype(x.dtype).itemsize
    cost = pl.CostEstimate(
        flops=8 * BC * L,
        transcendentals=0,
        bytes_accessed=BC * L * itemsize + 2 * L * 4 + G * 8 * 256 * 4,
    )

    parts = pl.pallas_call(
        kernel,
        out_shape=jax.ShapeDtypeStruct((G, 8, 256), jnp.float32),
        grid_spec=pltpu.PrefetchScalarGridSpec(
            num_scalar_prefetch=0,
            grid=(G,),
            in_specs=[
                pl.BlockSpec((TB, L), lambda i: (i, 0)),
                pl.BlockSpec((1, L), lambda i: (0, 0)),   # h-edge mask (resident)
                pl.BlockSpec((1, L), lambda i: (0, 0)),   # w-edge mask (resident)
            ],
            out_specs=pl.BlockSpec((1, 8, 256), lambda i: (i, 0, 0)),
        ),
        compiler_params=pltpu.CompilerParams(
            dimension_semantics=("parallel",),    # no carried accumulator
            vmem_limit_bytes=vmem_limit,
        ),
        cost_estimate=cost,
    )(xf, h_mask, w_mask)

    # Tiny final reduction over per-block partials.
    h_tv = jnp.sum(parts[:, 0, 0])
    w_tv = jnp.sum(parts[:, 0, 128])

    # Same normalization (and same H==1 / W==1 divide-by-zero behavior) as
    # the PyTorch module.
    count_h = C * (H - 1) * W
    count_w = C * H * (W - 1)
    return tv_loss_weight * 2.0 * (h_tv / count_h + w_tv / count_w) / B


def _tv_loss_ref(x, tv_loss_weight=1.0):
    B, C, H, W = x.shape
    xf = x.astype(jnp.float32)
    h_tv = jnp.sum((xf[:, :, 1:, :] - xf[:, :, :-1, :]) ** 2)
    w_tv = jnp.sum((xf[:, :, :, 1:] - xf[:, :, :, :-1]) ** 2)
    count_h = C * (H - 1) * W
    count_w = C * H * (W - 1)
    return tv_loss_weight * 2.0 * (h_tv / count_h + w_tv / count_w) / B


if __name__ == "__main__":
    key = jax.random.PRNGKey(0)
    x = jax.random.normal(key, (2, 4, 16, 16), dtype=jnp.float32)

    out = tv_loss(x, tv_loss_weight=1.0)
    out = jax.block_until_ready(out)

    ref = _tv_loss_ref(x, tv_loss_weight=1.0)
    assert jnp.allclose(out, ref, rtol=1e-5, atol=1e-5), (out, ref)

    print("KERNEL_OK")
</pallas_src>

<mosaic_0001>
module attributes {stable_mosaic.version = 11 : i64} {
  func.func @_tv_kernel(%arg0: i32, %arg1: memref<8x256xf32, #tpu.memory_space<vmem>>, %arg2: memref<1x256xf32, #tpu.memory_space<vmem>>, %arg3: memref<1x256xf32, #tpu.memory_space<vmem>>, %arg4: memref<1x8x256xf32, #tpu.memory_space<vmem>>) attributes {dimension_semantics = [#tpu.dimension_semantics<parallel>], iteration_bounds = array<i64: 1>, scalar_prefetch = 0 : i64, scratch_operands = 0 : i64, tpu.core_type = #tpu.core_type<tc>, window_params = [{transform_indices = @transform_0, window_bounds = array<i64: 8, 256>}, {pipeline_mode = #tpu.pipeline_mode<synchronous>, transform_indices = @transform_1, window_bounds = array<i64: 1, 256>}, {pipeline_mode = #tpu.pipeline_mode<synchronous>, transform_indices = @transform_2, window_bounds = array<i64: 1, 256>}, {transform_indices = @transform_3, window_bounds = array<i64: 1, 8, 256>}]} {
    %c0 = arith.constant 0 : index
    %c0_0 = arith.constant 0 : index
    %0 = vector.load %arg1[%c0, %c0_0] : memref<8x256xf32, #tpu.memory_space<vmem>>, vector<8x256xf32>
    %c0_1 = arith.constant 0 : index
    %c0_2 = arith.constant 0 : index
    %1 = vector.load %arg2[%c0_1, %c0_2] : memref<1x256xf32, #tpu.memory_space<vmem>>, vector<1x256xf32>
    %c0_3 = arith.constant 0 : index
    %c0_4 = arith.constant 0 : index
    %2 = vector.load %arg3[%c0_3, %c0_4] : memref<1x256xf32, #tpu.memory_space<vmem>>, vector<1x256xf32>
    %c240_i32 = arith.constant 240 : i32
    %3 = tpu.dynamic_rotate %0 by %c240_i32 dim 1 : vector<8x256xf32>, i32 -> vector<8x256xf32>
    %c255_i32 = arith.constant 255 : i32
    %4 = tpu.dynamic_rotate %0 by %c255_i32 dim 1 : vector<8x256xf32>, i32 -> vector<8x256xf32>
    %5 = arith.subf %3, %0 : vector<8x256xf32>
    %6 = arith.subf %4, %0 : vector<8x256xf32>
    %7 = arith.mulf %5, %5 : vector<8x256xf32>
    %8 = vector.broadcast %1 : vector<1x256xf32> to vector<8x256xf32>
    %9 = arith.mulf %7, %8 : vector<8x256xf32>
    %cst = arith.constant dense<0.000000e+00> : vector<8xf32>
    %10 = vector.multi_reduction <add>, %9, %cst [1] : vector<8x256xf32> to vector<8xf32>
    %11 = vector.shape_cast %10 : vector<8xf32> to vector<8x1xf32>
    %12 = arith.mulf %6, %6 : vector<8x256xf32>
    %13 = vector.broadcast %2 : vector<1x256xf32> to vector<8x256xf32>
    %14 = arith.mulf %12, %13 : vector<8x256xf32>
    %cst_5 = arith.constant dense<0.000000e+00> : vector<8xf32>
    %15 = vector.multi_reduction <add>, %14, %cst_5 [1] : vector<8x256xf32> to vector<8xf32>
    %16 = vector.shape_cast %15 : vector<8xf32> to vector<8x1xf32>
    %17 = vector.shape_cast %11 : vector<8x1xf32> to vector<1x8x1xf32>
    %cst_6 = arith.constant dense<0.000000e+00> : vector<1xf32>
    %18 = vector.multi_reduction <add>, %17, %cst_6 [1, 2] : vector<1x8x1xf32> to vector<1xf32>
    %19 = vector.shape_cast %18 : vector<1xf32> to vector<1x1x1xf32>
    %20 = vector.extract %19[0, 0, 0] : f32 from vector<1x1x1xf32>
    %21 = vector.shape_cast %16 : vector<8x1xf32> to vector<1x8x1xf32>
    %cst_7 = arith.constant dense<0.000000e+00> : vector<1xf32>
    %22 = vector.multi_reduction <add>, %21, %cst_7 [1, 2] : vector<1x8x1xf32> to vector<1xf32>
    %23 = vector.shape_cast %22 : vector<1xf32> to vector<1x1x1xf32>
    %24 = vector.extract %23[0, 0, 0] : f32 from vector<1x1x1xf32>
    %25 = vector.broadcast %20 : f32 to vector<1x8x128xf32>
    %c0_8 = arith.constant 0 : index
    %c0_9 = arith.constant 0 : index
    %c0_10 = arith.constant 0 : index
    %26 = vector.load %arg4[%c0_8, %c0_9, %c0_10] : memref<1x8x256xf32, #tpu.memory_space<vmem>>, vector<1x8x128xf32>
    tpu.vector_store %arg4[%c0_8, %c0_9, %c0_10], %25 {strides = array<i32>} : memref<1x8x256xf32, #tpu.memory_space<vmem>>, vector<1x8x128xf32>,
    %27 = vector.broadcast %24 : f32 to vector<1x8x128xf32>
    %c0_11 = arith.constant 0 : index
    %c0_12 = arith.constant 0 : index
    %c128 = arith.constant 128 : index
    %28 = vector.load %arg4[%c0_11, %c0_12, %c128] : memref<1x8x256xf32, #tpu.memory_space<vmem>>, vector<1x8x128xf32>
    tpu.vector_store %arg4[%c0_11, %c0_12, %c128], %27 {strides = array<i32>} : memref<1x8x256xf32, #tpu.memory_space<vmem>>, vector<1x8x128xf32>,
    return
  }
  func.func @transform_0(%arg0: i32) -> (i32, i32) {
    %c0_i32 = arith.constant 0 : i32
    %c0_i32_0 = arith.constant 0 : i32
    return %arg0, %c0_i32 : i32, i32
  }
  func.func @transform_1(%arg0: i32) -> (i32, i32) {
    %c0_i32 = arith.constant 0 : i32
    %c0_i32_0 = arith.constant 0 : i32
    %c0_i32_1 = arith.constant 0 : i32
    return %c0_i32, %c0_i32_0 : i32, i32
  }
  func.func @transform_2(%arg0: i32) -> (i32, i32) {
    %c0_i32 = arith.constant 0 : i32
    %c0_i32_0 = arith.constant 0 : i32
    %c0_i32_1 = arith.constant 0 : i32
    return %c0_i32, %c0_i32_0 : i32, i32
  }
  func.func @transform_3(%arg0: i32) -> (i32, i32, i32) {
    %c0_i32 = arith.constant 0 : i32
    %c0_i32_0 = arith.constant 0 : i32
    %c0_i32_1 = arith.constant 0 : i32
    return %arg0, %c0_i32, %c0_i32_0 : i32, i32, i32
  }
}

</mosaic_0001>

<llo_original>
// kernel: tpu_custom_call.1
$region0: #{tpu_custom_call.1}
  #allocation0 [shape = 'u32[]', space=smem, size = 0x4, offset = 0x4, fixed_abs, tag = 'smem constant byte address 0x4 - core index']
  #allocation1 [shape = 'u32[144,128]{1,0:T(1,128)}', space=vmem, size = 0x12000, scoped, tag = 'internal scratch']
  %s0 = inlined_call_operand.hbm [shape: f32[8,256], index: 0, kind: input, shape index: {}]
  %s1 = inlined_call_operand.vmem [shape: f32[1,256], index: 1, kind: input, shape index: {}]
  %s2 = inlined_call_operand.vmem [shape: f32[1,256], index: 2, kind: input, shape index: {}]
  %s3 = inlined_call_operand.hbm [shape: f32[1,8,256], index: 3, kind: output, shape index: {}]
  %s4 = sld [smem:[#allocation0]]
  $region26: #{tpu_custom_call.1} parent=0
    _
  %s6 = ssub.s32 1, %s4
  %s7 = scalar_select 0, %s6, %s4
  $region1: #{tpu_custom_call.1} parent=0
    #allocation2 [shape = 'u8[8192]{0}', space=vmem, size = 0x2000, scoped, tag = 'input window, operand 0, single buffered']
    #allocation3 [shape = 's32[1]{0}', space=sflag, size = 0x4, scoped, tag = 'scoped memory for tpu_custom_call.1']
    #allocation4 [shape = 's32[1]{0}', space=sflag, size = 0x4, scoped, tag = 'scoped memory for tpu_custom_call.1']
    #allocation5 [shape = 'u8[8192]{0}', space=vmem, size = 0x2000, scoped, tag = 'output window, operand 0, single buffered']
    %8 = vsyncpa [#allocation3], 0
    %9 = vsyncpa [#allocation4], 0
    // Predicated region
    $region2: #{tpu_custom_call.1} parent=1 // pred_check
      _
    $region3: #{tpu_custom_call.1} parent=1 // pred_check_branch
      %11 = sbr.rel (0) target = $region5
    $region4: #{tpu_custom_call.1} parent=1 // pred_region
      %s13 = ssub.s32 256, 256
      %14 = vsyncadd [#allocation3], %s13
      %s16 = sshll.u32 [#allocation2], 4
      %s17 = int_to_ptr.vmem [resolvable:$true] %s16
      %19 = dma.hbm_to_vmem [thread:$0]  %s0, 256, %s17, [#allocation3]
    $region5: #{tpu_custom_call.1} parent=1 // pred_fallthru
      _
    // Predicated region
    $region6: #{tpu_custom_call.1} parent=1 // pred_check
      _
    $region7: #{tpu_custom_call.1} parent=1 // pred_check_branch
      %21 = sbr.rel (0) target = $region9
    $region8: #{tpu_custom_call.1} parent=1 // pred_region
      _
    $region9: #{tpu_custom_call.1} parent=1 // pred_fallthru
      _
    // Predicated region
    $region10: #{tpu_custom_call.1} parent=1 // pred_check
      _
    $region11: #{tpu_custom_call.1} parent=1 // pred_check_branch
      %23 = sbr.rel (0) target = $region13
    $region12: #{tpu_custom_call.1} parent=1 // pred_region
      _
    $region13: #{tpu_custom_call.1} parent=1 // pred_fallthru
      _
    // Predicated region
    $region14: #{tpu_custom_call.1} parent=1 // pred_check
      _
    $region15: #{tpu_custom_call.1} parent=1 // pred_check_branch
      %25 = sbr.rel (0) target = $region17
    $region16: #{tpu_custom_call.1} parent=1 // pred_region
      %26 = dma.done [#allocation3], 256
    $region17: #{tpu_custom_call.1} parent=1 // pred_fallthru
      _
    %v27 = vld [vmem:[#allocation2] sm:$0xff]
    %v28 = vld [vmem:[#allocation2 + $0x8] sm:$0xff]
    %v29 = vld [vmem:[%s1] sm:$0x3]
    %v30 = vld [vmem:[%s2] sm:$0x3]
    %31 = vrot.lane.b32.xlu0 %v27, 112
    %v32 = vpop.permute.xlu0 %31
    %33 = vrot.lane.b32.xlu0 %v28, 112
    %v34 = vpop.permute.xlu0 %33
    %v35 = vlaneseq
    %v36 = vand.u32 %v35, 127
    %vm37 = vcmp.lt.s32.totalorder %v36, 112
    %v38 = vsel %vm37, %v32, %v34
    %v39 = vsel %vm37, %v34, %v32
    %40 = vrot.lane.b32.xlu0 %v27, 127
    %v41 = vpop.permute.xlu0 %40
    %42 = vrot.lane.b32.xlu0 %v28, 127
    %v43 = vpop.permute.xlu0 %42
    %vm44 = vcmp.lt.s32.totalorder %v36, 127
    %v45 = vsel %vm44, %v41, %v43
    %v46 = vsel %vm44, %v43, %v41
    %v47 = vsub.f32 %v38, %v27
    %v48 = vsub.f32 %v39, %v28
    %v49 = vsub.f32 %v45, %v27
    %v50 = vsub.f32 %v46, %v28
    %v51 = vmul.f32 %v47, %v47
    %v52 = vmul.f32 %v48, %v48
    %v54 = vlaneseq
    %v55 = vshrl.u32 %v54, 7
    %v56 = vsub.s32 0, %v55
    %v57 = vrot.slane %v29, %v56
    %v58 = vlaneseq
    %v59 = vshrl.u32 %v58, 7
    %v60 = vsub.s32 1, %v59
    %v61 = vrot.slane %v29, %v60
    %v64 = vmul.f32 %v51, %v57
    %v65 = vmul.f32 %v52, %v61
    %v66 = vadd.f32 %v64, %v65
    %67 = vadd.xlane.f32.xlu0 %v66
    %v68 = vpop.xlane.xlu0 %67
    %v69 = vmul.f32 %v49, %v49
    %v70 = vmul.f32 %v50, %v50
    %v72 = vlaneseq
    %v73 = vshrl.u32 %v72, 7
    %v74 = vsub.s32 0, %v73
    %v75 = vrot.slane %v30, %v74
    %v76 = vlaneseq
    %v77 = vshrl.u32 %v76, 7
    %v78 = vsub.s32 1, %v77
    %v79 = vrot.slane %v30, %v78
    %v82 = vmul.f32 %v69, %v75
    %v83 = vmul.f32 %v70, %v79
    %v84 = vadd.f32 %v82, %v83
    %85 = vadd.xlane.f32.xlu0 %v84
    %v86 = vpop.xlane.xlu0 %85
    %vm87 = vcmask 7168
    %v88 = vsel %vm87, %v68, 0.0
    %89 = vadd.xlane.f32.xlu0 %v88
    %v90 = vpop.xlane.xlu0 %89
    %v91 = vrot.slane %v90, 4
    %v92 = vadd.f32 %v90, %v91
    %v93 = vrot.slane %v92, 2
    %v94 = vadd.f32 %v92, %v93
    %v95 = vrot.slane %v94, 1
    %v96 = vadd.f32 %v94, %v95
    %s97 = vtos %v96
    %v98 = vsel %vm87, %v86, 0.0
    %99 = vadd.xlane.f32.xlu0 %v98
    %v100 = vpop.xlane.xlu0 %99
    %v101 = vrot.slane %v100, 4
    %v102 = vadd.f32 %v100, %v101
    %v103 = vrot.slane %v102, 2
    %v104 = vadd.f32 %v102, %v103
    %v105 = vrot.slane %v104, 1
    %v106 = vadd.f32 %v104, %v105
    %s107 = vtos %v106
    %v108 = vstv %s97
    %109 = vst [vmem:[#allocation5] sm:$0xff] %v108
    %v110 = vstv %s107
    %111 = vst [vmem:[#allocation5 + $0x8] sm:$0xff] %v110
    // Predicated region
    $region18: #{tpu_custom_call.1} parent=1 // pred_check
      _
    $region19: #{tpu_custom_call.1} parent=1 // pred_check_branch
      %113 = sbr.rel (0) target = $region21
    $region20: #{tpu_custom_call.1} parent=1 // pred_region
      %s115 = ssub.s32 256, 256
      %116 = vsyncadd [#allocation4], %s115
      %s118 = sshll.u32 [#allocation5], 4
      %s119 = int_to_ptr.vmem [resolvable:$true] %s118
      %121 = dma.vmem_to_hbm [thread:$0]  %s119, 256, %s3, [#allocation4]
    $region21: #{tpu_custom_call.1} parent=1 // pred_fallthru
      _
    // Predicated region
    $region22: #{tpu_custom_call.1} parent=1 // pred_check
      _
    $region23: #{tpu_custom_call.1} parent=1 // pred_check_branch
      %123 = sbr.rel (0) target = $region25
    $region24: #{tpu_custom_call.1} parent=1 // pred_region
      %124 = dma.done [#allocation4], 256
    $region25: #{tpu_custom_call.1} parent=1 // pred_fallthru
      _
    %125 = vsyncpa [#allocation3], 1
    %126 = vsyncpa [#allocation4], 1

</llo_original>
